<compile_context>
chip_gen: v7x
topology: tpu7x:2x2x1
jax: 0.10.0
libtpu: 0.0.40
codegen_flags: <defaults>
</compile_context>

<pallas_src>
import jax
import jax.numpy as jnp
from jax.experimental import pallas as pl
from jax.experimental.pallas import tpu as pltpu

DIM = 8                 # in_dim of CycledViewProjection
FEAT = DIM * DIM        # 64 = dim*dim, the Linear width
OUT_W = 2 * FEAT        # 128: lane-dense combined output (t | rt)


def _round_up(n, m):
    return ((n + m - 1) // m) * m


def _cvp_kernel(x_ref,
                w1_ref, b1_ref, w2_ref, b2_ref,     # transform_module
                w3_ref, b3_ref, w4_ref, b4_ref,     # retransform_module
                out_ref):
    """One row-tile of the full CycledViewProjection forward.

    x_ref:   [TM, FEAT]   rows = flattened (B*C), features = H*W
    w*_ref:  [FEAT, FEAT] (stored as [in, out]); b*_ref: [1, FEAT]
    out_ref: [TM, 2*FEAT] lanes 0..63 = transform, lanes 64..127 = retransform
    """
    f32 = jnp.float32
    x = x_ref[...].astype(f32)

    # transform_module: Linear -> ReLU -> Linear -> ReLU
    h1 = jnp.dot(x, w1_ref[...].astype(f32), preferred_element_type=f32)
    h1 = jnp.maximum(h1 + b1_ref[...].astype(f32), 0.0)
    t = jnp.dot(h1, w2_ref[...].astype(f32), preferred_element_type=f32)
    t = jnp.maximum(t + b2_ref[...].astype(f32), 0.0)

    # retransform_module: Linear -> ReLU -> Linear -> ReLU (applied to t)
    h2 = jnp.dot(t, w3_ref[...].astype(f32), preferred_element_type=f32)
    h2 = jnp.maximum(h2 + b3_ref[...].astype(f32), 0.0)
    rt = jnp.dot(h2, w4_ref[...].astype(f32), preferred_element_type=f32)
    rt = jnp.maximum(rt + b4_ref[...].astype(f32), 0.0)

    # Single lane-dense (128-wide) store: unmasked vst instead of two masked
    # 64-lane partial stores.
    out_ref[...] = jnp.concatenate([t, rt], axis=-1).astype(out_ref.dtype)


def cycled_view_projection(x, params, tm=1024):
    """x: [B, C, H, W] with H == W == DIM.
    Returns (transform_feature, retransform_features), both [B, C, DIM, DIM]."""
    B, C, H, W = x.shape
    assert H == DIM and W == DIM, "spatial dims must equal in_dim"
    M = B * C
    x2d = x.reshape(M, FEAT)

    # Fixed row tile (multiple of 8); pad the row axis so the grid divides
    # evenly.  Padded rows are sliced off after the call.
    tm = min(tm, _round_up(M, 8))
    tm = _round_up(tm, 8)
    m_pad = _round_up(M, tm)
    if m_pad != M:
        x2d = jnp.pad(x2d, ((0, m_pad - M), (0, 0)))
    grid = m_pad // tm

    (w1, b1, w2, b2, w3, b3, w4, b4) = params

    row_spec = pl.BlockSpec((tm, FEAT), lambda i: (i, 0))
    out_spec = pl.BlockSpec((tm, OUT_W), lambda i: (i, 0))
    # Grid-invariant weights/biases: block index never changes, so Pallas
    # skips the per-step DMA.
    w_spec = pl.BlockSpec((FEAT, FEAT), lambda i: (0, 0))
    b_spec = pl.BlockSpec((1, FEAT), lambda i: (0, 0))

    io_bytes = jnp.dtype(x.dtype).itemsize
    cost = pl.CostEstimate(
        flops=8 * m_pad * FEAT * FEAT,                         # 4 matmuls, 2*M*64*64 each
        transcendentals=0,
        bytes_accessed=(m_pad * FEAT + m_pad * OUT_W) * io_bytes
                       + 4 * (FEAT * FEAT + FEAT) * 4,
    )

    out = pl.pallas_call(
        _cvp_kernel,
        out_shape=jax.ShapeDtypeStruct((m_pad, OUT_W), x.dtype),
        grid_spec=pltpu.PrefetchScalarGridSpec(
            num_scalar_prefetch=0,
            grid=(grid,),
            in_specs=[row_spec,
                      w_spec, b_spec, w_spec, b_spec,
                      w_spec, b_spec, w_spec, b_spec],
            out_specs=out_spec,
        ),
        compiler_params=pltpu.CompilerParams(
            dimension_semantics=("parallel",)),   # shards row tiles across TCs on v7x
        cost_estimate=cost,
    )(x2d, w1, b1, w2, b2, w3, b3, w4, b4)

    t_flat = out[:M, :FEAT]
    rt_flat = out[:M, FEAT:]
    transform_feature = t_flat.reshape(B, C, DIM, DIM)
    retransform_features = rt_flat.reshape(B, C, DIM, DIM)
    return transform_feature, retransform_features


def init_params(key, dtype=jnp.float32):
    """Deterministic synthetic weights: four Linear(FEAT, FEAT) layers.
    Stored as [in, out] (already transposed vs. torch's [out, in])."""
    ks = jax.random.split(key, 8)
    bound = 1.0 / jnp.sqrt(FEAT)

    def lin(kw, kb):
        w = jax.random.uniform(kw, (FEAT, FEAT), jnp.float32, -bound, bound).astype(dtype)
        b = jax.random.uniform(kb, (1, FEAT), jnp.float32, -bound, bound).astype(dtype)
        return w, b

    w1, b1 = lin(ks[0], ks[1])
    w2, b2 = lin(ks[2], ks[3])
    w3, b3 = lin(ks[4], ks[5])
    w4, b4 = lin(ks[6], ks[7])
    return (w1, b1, w2, b2, w3, b3, w4, b4)


def _reference(x, params):
    """Pure-JAX reference mirroring the PyTorch forward."""
    (w1, b1, w2, b2, w3, b3, w4, b4) = params
    B, C, H, W = x.shape
    xf = x.reshape(B, C, FEAT).astype(jnp.float32)
    h = jax.nn.relu(xf @ w1.astype(jnp.float32) + b1.astype(jnp.float32))
    t = jax.nn.relu(h @ w2.astype(jnp.float32) + b2.astype(jnp.float32))
    h2 = jax.nn.relu(t @ w3.astype(jnp.float32) + b3.astype(jnp.float32))
    rt = jax.nn.relu(h2 @ w4.astype(jnp.float32) + b4.astype(jnp.float32))
    return t.reshape(B, C, DIM, DIM), rt.reshape(B, C, DIM, DIM)


if __name__ == "__main__":
    key = jax.random.PRNGKey(0)
    kx, kp = jax.random.split(key)

    # Small demo shape consistent with the module (in_dim=8 => H=W=8).
    B, C = 2, 4
    x = jax.random.normal(kx, (B, C, DIM, DIM), jnp.float32)
    params = init_params(kp)
    # TODO(synk): for bandwidth-bound production shapes on v6e/v7x, carry x and
    # weights in bfloat16 (kernel already accumulates/activates in f32).

    t, rt = cycled_view_projection(x, params)
    jax.block_until_ready((t, rt))

    t_ref, rt_ref = _reference(x, params)
    assert t.shape == (B, C, DIM, DIM) and rt.shape == (B, C, DIM, DIM)
    assert jnp.allclose(t, t_ref, atol=1e-5, rtol=1e-5)
    assert jnp.allclose(rt, rt_ref, atol=1e-5, rtol=1e-5)

    # Exercise the multi-tile path (grid > 1) as well.
    B2, C2 = 32, 64                      # M = 2048 rows -> 2 grid steps at tm=1024
    x_big = jax.random.normal(kx, (B2, C2, DIM, DIM), jnp.float32)
    t2, rt2 = cycled_view_projection(x_big, params, tm=1024)
    jax.block_until_ready((t2, rt2))
    t2_ref, rt2_ref = _reference(x_big, params)
    assert jnp.allclose(t2, t2_ref, atol=1e-5, rtol=1e-5)
    assert jnp.allclose(rt2, rt2_ref, atol=1e-5, rtol=1e-5)

    print("KERNEL_OK")
</pallas_src>

<mosaic_0001>
module attributes {stable_mosaic.version = 11 : i64} {
  func.func @_cvp_kernel(%arg0: i32, %arg1: memref<8x64xf32, #tpu.memory_space<vmem>>, %arg2: memref<64x64xf32, #tpu.memory_space<vmem>>, %arg3: memref<1x64xf32, #tpu.memory_space<vmem>>, %arg4: memref<64x64xf32, #tpu.memory_space<vmem>>, %arg5: memref<1x64xf32, #tpu.memory_space<vmem>>, %arg6: memref<64x64xf32, #tpu.memory_space<vmem>>, %arg7: memref<1x64xf32, #tpu.memory_space<vmem>>, %arg8: memref<64x64xf32, #tpu.memory_space<vmem>>, %arg9: memref<1x64xf32, #tpu.memory_space<vmem>>, %arg10: memref<8x128xf32, #tpu.memory_space<vmem>>) attributes {dimension_semantics = [#tpu.dimension_semantics<parallel>], iteration_bounds = array<i64: 1>, scalar_prefetch = 0 : i64, scratch_operands = 0 : i64, tpu.core_type = #tpu.core_type<tc>, window_params = [{transform_indices = @transform_0, window_bounds = array<i64: 8, 64>}, {pipeline_mode = #tpu.pipeline_mode<synchronous>, transform_indices = @transform_1, window_bounds = array<i64: 64, 64>}, {pipeline_mode = #tpu.pipeline_mode<synchronous>, transform_indices = @transform_2, window_bounds = array<i64: 1, 64>}, {pipeline_mode = #tpu.pipeline_mode<synchronous>, transform_indices = @transform_3, window_bounds = array<i64: 64, 64>}, {pipeline_mode = #tpu.pipeline_mode<synchronous>, transform_indices = @transform_4, window_bounds = array<i64: 1, 64>}, {pipeline_mode = #tpu.pipeline_mode<synchronous>, transform_indices = @transform_5, window_bounds = array<i64: 64, 64>}, {pipeline_mode = #tpu.pipeline_mode<synchronous>, transform_indices = @transform_6, window_bounds = array<i64: 1, 64>}, {pipeline_mode = #tpu.pipeline_mode<synchronous>, transform_indices = @transform_7, window_bounds = array<i64: 64, 64>}, {pipeline_mode = #tpu.pipeline_mode<synchronous>, transform_indices = @transform_8, window_bounds = array<i64: 1, 64>}, {transform_indices = @transform_9, window_bounds = array<i64: 8, 128>}]} {
    %c0 = arith.constant 0 : index
    %c0_0 = arith.constant 0 : index
    %0 = vector.load %arg1[%c0, %c0_0] : memref<8x64xf32, #tpu.memory_space<vmem>>, vector<8x64xf32>
    %c0_1 = arith.constant 0 : index
    %c0_2 = arith.constant 0 : index
    %1 = vector.load %arg2[%c0_1, %c0_2] : memref<64x64xf32, #tpu.memory_space<vmem>>, vector<64x64xf32>
    %cst = arith.constant dense<0.000000e+00> : vector<8x64xf32>
    %2 = tpu.matmul %0, %1, %cst {dimension_numbers = #tpu.dot_dimension_numbers<[1], [0], [0], [1], [0, 0, 1, 1], [], []>} : vector<8x64xf32>, vector<64x64xf32>, vector<8x64xf32> -> vector<8x64xf32>
    %c0_3 = arith.constant 0 : index
    %c0_4 = arith.constant 0 : index
    %3 = vector.load %arg3[%c0_3, %c0_4] : memref<1x64xf32, #tpu.memory_space<vmem>>, vector<1x64xf32>
    %4 = vector.broadcast %3 : vector<1x64xf32> to vector<8x64xf32>
    %5 = arith.addf %2, %4 : vector<8x64xf32>
    %cst_5 = arith.constant 0.000000e+00 : f32
    %6 = vector.broadcast %cst_5 : f32 to vector<8x64xf32>
    %7 = arith.maximumf %5, %6 : vector<8x64xf32>
    %c0_6 = arith.constant 0 : index
    %c0_7 = arith.constant 0 : index
    %8 = vector.load %arg4[%c0_6, %c0_7] : memref<64x64xf32, #tpu.memory_space<vmem>>, vector<64x64xf32>
    %cst_8 = arith.constant dense<0.000000e+00> : vector<8x64xf32>
    %9 = tpu.matmul %7, %8, %cst_8 {dimension_numbers = #tpu.dot_dimension_numbers<[1], [0], [0], [1], [0, 0, 1, 1], [], []>} : vector<8x64xf32>, vector<64x64xf32>, vector<8x64xf32> -> vector<8x64xf32>
    %c0_9 = arith.constant 0 : index
    %c0_10 = arith.constant 0 : index
    %10 = vector.load %arg5[%c0_9, %c0_10] : memref<1x64xf32, #tpu.memory_space<vmem>>, vector<1x64xf32>
    %11 = vector.broadcast %10 : vector<1x64xf32> to vector<8x64xf32>
    %12 = arith.addf %9, %11 : vector<8x64xf32>
    %cst_11 = arith.constant 0.000000e+00 : f32
    %13 = vector.broadcast %cst_11 : f32 to vector<8x64xf32>
    %14 = arith.maximumf %12, %13 : vector<8x64xf32>
    %c0_12 = arith.constant 0 : index
    %c0_13 = arith.constant 0 : index
    %15 = vector.load %arg6[%c0_12, %c0_13] : memref<64x64xf32, #tpu.memory_space<vmem>>, vector<64x64xf32>
    %cst_14 = arith.constant dense<0.000000e+00> : vector<8x64xf32>
    %16 = tpu.matmul %14, %15, %cst_14 {dimension_numbers = #tpu.dot_dimension_numbers<[1], [0], [0], [1], [0, 0, 1, 1], [], []>} : vector<8x64xf32>, vector<64x64xf32>, vector<8x64xf32> -> vector<8x64xf32>
    %c0_15 = arith.constant 0 : index
    %c0_16 = arith.constant 0 : index
    %17 = vector.load %arg7[%c0_15, %c0_16] : memref<1x64xf32, #tpu.memory_space<vmem>>, vector<1x64xf32>
    %18 = vector.broadcast %17 : vector<1x64xf32> to vector<8x64xf32>
    %19 = arith.addf %16, %18 : vector<8x64xf32>
    %cst_17 = arith.constant 0.000000e+00 : f32
    %20 = vector.broadcast %cst_17 : f32 to vector<8x64xf32>
    %21 = arith.maximumf %19, %20 : vector<8x64xf32>
    %c0_18 = arith.constant 0 : index
    %c0_19 = arith.constant 0 : index
    %22 = vector.load %arg8[%c0_18, %c0_19] : memref<64x64xf32, #tpu.memory_space<vmem>>, vector<64x64xf32>
    %cst_20 = arith.constant dense<0.000000e+00> : vector<8x64xf32>
    %23 = tpu.matmul %21, %22, %cst_20 {dimension_numbers = #tpu.dot_dimension_numbers<[1], [0], [0], [1], [0, 0, 1, 1], [], []>} : vector<8x64xf32>, vector<64x64xf32>, vector<8x64xf32> -> vector<8x64xf32>
    %c0_21 = arith.constant 0 : index
    %c0_22 = arith.constant 0 : index
    %24 = vector.load %arg9[%c0_21, %c0_22] : memref<1x64xf32, #tpu.memory_space<vmem>>, vector<1x64xf32>
    %25 = vector.broadcast %24 : vector<1x64xf32> to vector<8x64xf32>
    %26 = arith.addf %23, %25 : vector<8x64xf32>
    %cst_23 = arith.constant 0.000000e+00 : f32
    %27 = vector.broadcast %cst_23 : f32 to vector<8x64xf32>
    %28 = arith.maximumf %26, %27 : vector<8x64xf32>
    %29 = tpu.concatenate %14, %28 in 1 : vector<8x64xf32>, vector<8x64xf32> -> vector<8x128xf32>
    %c0_24 = arith.constant 0 : index
    %c0_25 = arith.constant 0 : index
    %30 = vector.load %arg10[%c0_24, %c0_25] : memref<8x128xf32, #tpu.memory_space<vmem>>, vector<8x128xf32>
    tpu.vector_store %arg10[%c0_24, %c0_25], %29 {strides = array<i32>} : memref<8x128xf32, #tpu.memory_space<vmem>>, vector<8x128xf32>,
    return
  }
  func.func @transform_0(%arg0: i32) -> (i32, i32) {
    %c0_i32 = arith.constant 0 : i32
    %c0_i32_0 = arith.constant 0 : i32
    return %arg0, %c0_i32 : i32, i32
  }
  func.func @transform_1(%arg0: i32) -> (i32, i32) {
    %c0_i32 = arith.constant 0 : i32
    %c0_i32_0 = arith.constant 0 : i32
    %c0_i32_1 = arith.constant 0 : i32
    return %c0_i32, %c0_i32_0 : i32, i32
  }
  func.func @transform_2(%arg0: i32) -> (i32, i32) {
    %c0_i32 = arith.constant 0 : i32
    %c0_i32_0 = arith.constant 0 : i32
    %c0_i32_1 = arith.constant 0 : i32
    return %c0_i32, %c0_i32_0 : i32, i32
  }
  func.func @transform_3(%arg0: i32) -> (i32, i32) {
    %c0_i32 = arith.constant 0 : i32
    %c0_i32_0 = arith.constant 0 : i32
    %c0_i32_1 = arith.constant 0 : i32
    return %c0_i32, %c0_i32_0 : i32, i32
  }
  func.func @transform_4(%arg0: i32) -> (i32, i32) {
    %c0_i32 = arith.constant 0 : i32
    %c0_i32_0 = arith.constant 0 : i32
    %c0_i32_1 = arith.constant 0 : i32
    return %c0_i32, %c0_i32_0 : i32, i32
  }
  func.func @transform_5(%arg0: i32) -> (i32, i32) {
    %c0_i32 = arith.constant 0 : i32
    %c0_i32_0 = arith.constant 0 : i32
    %c0_i32_1 = arith.constant 0 : i32
    return %c0_i32, %c0_i32_0 : i32, i32
  }
  func.func @transform_6(%arg0: i32) -> (i32, i32) {
    %c0_i32 = arith.constant 0 : i32
    %c0_i32_0 = arith.constant 0 : i32
    %c0_i32_1 = arith.constant 0 : i32
    return %c0_i32, %c0_i32_0 : i32, i32
  }
  func.func @transform_7(%arg0: i32) -> (i32, i32) {
    %c0_i32 = arith.constant 0 : i32
    %c0_i32_0 = arith.constant 0 : i32
    %c0_i32_1 = arith.constant 0 : i32
    return %c0_i32, %c0_i32_0 : i32, i32
  }
  func.func @transform_8(%arg0: i32) -> (i32, i32) {
    %c0_i32 = arith.constant 0 : i32
    %c0_i32_0 = arith.constant 0 : i32
    %c0_i32_1 = arith.constant 0 : i32
    return %c0_i32, %c0_i32_0 : i32, i32
  }
  func.func @transform_9(%arg0: i32) -> (i32, i32) {
    %c0_i32 = arith.constant 0 : i32
    %c0_i32_0 = arith.constant 0 : i32
    return %arg0, %c0_i32 : i32, i32
  }
}

</mosaic_0001>

<llo_original>
// kernel: tpu_custom_call.1
$region0: #{tpu_custom_call.1}
  #allocation0 [shape = 'u32[]', space=smem, size = 0x4, offset = 0x4, fixed_abs, tag = 'smem constant byte address 0x4 - core index']
  #allocation1 [shape = 'u32[144,128]{1,0:T(1,128)}', space=vmem, size = 0x12000, scoped, tag = 'internal scratch']
  %s0 = inlined_call_operand.hbm [shape: f32[8,64], index: 0, kind: input, shape index: {}]
  %s1 = inlined_call_operand.hbm [shape: f32[64,64], index: 1, kind: input, shape index: {}]
  %s2 = inlined_call_operand.vmem [shape: f32[1,64], index: 2, kind: input, shape index: {}]
  %s3 = inlined_call_operand.hbm [shape: f32[64,64], index: 3, kind: input, shape index: {}]
  %s4 = inlined_call_operand.vmem [shape: f32[1,64], index: 4, kind: input, shape index: {}]
  %s5 = inlined_call_operand.hbm [shape: f32[64,64], index: 5, kind: input, shape index: {}]
  %s6 = inlined_call_operand.vmem [shape: f32[1,64], index: 6, kind: input, shape index: {}]
  %s7 = inlined_call_operand.hbm [shape: f32[64,64], index: 7, kind: input, shape index: {}]
  %s8 = inlined_call_operand.vmem [shape: f32[1,64], index: 8, kind: input, shape index: {}]
  %s9 = inlined_call_operand.hbm [shape: f32[8,128], index: 9, kind: output, shape index: {}]
  %s10 = sld [smem:[#allocation0]]
  $region66: #{tpu_custom_call.1} parent=0
    _
  %s12 = ssub.s32 1, %s10
  %s13 = scalar_select 0, %s12, %s10
  $region1: #{tpu_custom_call.1} parent=0
    #allocation2 [shape = 'u8[4096]{0}', space=vmem, size = 0x1000, scoped, tag = 'input window, operand 0, single buffered']
    #allocation3 [shape = 's32[1]{0}', space=sflag, size = 0x4, scoped, tag = 'scoped memory for tpu_custom_call.1']
    #allocation4 [shape = 's32[1]{0}', space=sflag, size = 0x4, scoped, tag = 'scoped memory for tpu_custom_call.1']
    #allocation5 [shape = 'u8[32768]{0}', space=vmem, size = 0x8000, scoped, tag = 'input window, operand 1, single buffered']
    #allocation6 [shape = 's32[1]{0}', space=sflag, size = 0x4, scoped, tag = 'scoped memory for tpu_custom_call.1']
    #allocation7 [shape = 'u8[32768]{0}', space=vmem, size = 0x8000, scoped, tag = 'input window, operand 3, single buffered']
    #allocation8 [shape = 'u8[32768]{0}', space=vmem, size = 0x8000, scoped, tag = 'input window, operand 5, single buffered']
    #allocation9 [shape = 's32[1]{0}', space=sflag, size = 0x4, scoped, tag = 'scoped memory for tpu_custom_call.1']
    #allocation10 [shape = 'u8[32768]{0}', space=vmem, size = 0x8000, scoped, tag = 'input window, operand 7, single buffered']
    #allocation11 [shape = 'u8[4096]{0}', space=vmem, size = 0x1000, scoped, tag = 'output window, operand 0, single buffered']
    %14 = vsyncpa [#allocation3], 0
    %15 = vsyncpa [#allocation6], 0
    %16 = vsyncpa [#allocation9], 0
    %17 = vsyncpa [#allocation4], 0
    // Predicated region
    $region2: #{tpu_custom_call.1} parent=1 // pred_check
      _
    $region3: #{tpu_custom_call.1} parent=1 // pred_check_branch
      %19 = sbr.rel (0) target = $region5
    $region4: #{tpu_custom_call.1} parent=1 // pred_region
      %s21 = ssub.s32 128, 128
      %22 = vsyncadd [#allocation3], %s21
      %s24 = sshll.u32 [#allocation2], 4
      %s25 = int_to_ptr.vmem [resolvable:$true] %s24
      %27 = dma.hbm_to_vmem [thread:$0]  %s0, 128, %s25, [#allocation3]
    $region5: #{tpu_custom_call.1} parent=1 // pred_fallthru
      _
    // Predicated region
    $region6: #{tpu_custom_call.1} parent=1 // pred_check
      _
    $region7: #{tpu_custom_call.1} parent=1 // pred_check_branch
      %29 = sbr.rel (0) target = $region9
    $region8: #{tpu_custom_call.1} parent=1 // pred_region
      %s31 = ssub.s32 1024, 1024
      %32 = vsyncadd [#allocation6], %s31
      %s33 = sshll.u32 [#allocation5], 4
      %s34 = int_to_ptr.vmem [resolvable:$true] %s33
      %39 = dma.hbm_to_vmem [thread:$0]  %s1, 1024, %s34, [#allocation6], 128, 128, 8
    $region9: #{tpu_custom_call.1} parent=1 // pred_fallthru
      _
    // Predicated region
    $region10: #{tpu_custom_call.1} parent=1 // pred_check
      _
    $region11: #{tpu_custom_call.1} parent=1 // pred_check_branch
      %41 = sbr.rel (0) target = $region13
    $region12: #{tpu_custom_call.1} parent=1 // pred_region
      _
    $region13: #{tpu_custom_call.1} parent=1 // pred_fallthru
      _
    // Predicated region
    $region14: #{tpu_custom_call.1} parent=1 // pred_check
      _
    $region15: #{tpu_custom_call.1} parent=1 // pred_check_branch
      %43 = sbr.rel (0) target = $region17
    $region16: #{tpu_custom_call.1} parent=1 // pred_region
      %s45 = ssub.s32 1024, 1024
      %46 = vsyncadd [#allocation6], %s45
      %s47 = sshll.u32 [#allocation7], 4
      %s48 = int_to_ptr.vmem [resolvable:$true] %s47
      %53 = dma.hbm_to_vmem [thread:$0]  %s3, 1024, %s48, [#allocation6], 128, 128, 8
    $region17: #{tpu_custom_call.1} parent=1 // pred_fallthru
      _
    // Predicated region
    $region18: #{tpu_custom_call.1} parent=1 // pred_check
      _
    $region19: #{tpu_custom_call.1} parent=1 // pred_check_branch
      %55 = sbr.rel (0) target = $region21
    $region20: #{tpu_custom_call.1} parent=1 // pred_region
      _
    $region21: #{tpu_custom_call.1} parent=1 // pred_fallthru
      _
    // Predicated region
    $region22: #{tpu_custom_call.1} parent=1 // pred_check
      _
    $region23: #{tpu_custom_call.1} parent=1 // pred_check_branch
      %57 = sbr.rel (0) target = $region25
    $region24: #{tpu_custom_call.1} parent=1 // pred_region
      %s59 = ssub.s32 1024, 1024
      %60 = vsyncadd [#allocation9], %s59
      %s61 = sshll.u32 [#allocation8], 4
      %s62 = int_to_ptr.vmem [resolvable:$true] %s61
      %67 = dma.hbm_to_vmem [thread:$0]  %s5, 1024, %s62, [#allocation9], 128, 128, 8
    $region25: #{tpu_custom_call.1} parent=1 // pred_fallthru
      _
    // Predicated region
    $region26: #{tpu_custom_call.1} parent=1 // pred_check
      _
    $region27: #{tpu_custom_call.1} parent=1 // pred_check_branch
      %69 = sbr.rel (0) target = $region29
    $region28: #{tpu_custom_call.1} parent=1 // pred_region
      _
    $region29: #{tpu_custom_call.1} parent=1 // pred_fallthru
      _
    // Predicated region
    $region30: #{tpu_custom_call.1} parent=1 // pred_check
      _
    $region31: #{tpu_custom_call.1} parent=1 // pred_check_branch
      %71 = sbr.rel (0) target = $region33
    $region32: #{tpu_custom_call.1} parent=1 // pred_region
      %s73 = ssub.s32 1024, 1024
      %74 = vsyncadd [#allocation9], %s73
      %s75 = sshll.u32 [#allocation10], 4
      %s76 = int_to_ptr.vmem [resolvable:$true] %s75
      %81 = dma.hbm_to_vmem [thread:$0]  %s7, 1024, %s76, [#allocation9], 128, 128, 8
    $region33: #{tpu_custom_call.1} parent=1 // pred_fallthru
      _
    // Predicated region
    $region34: #{tpu_custom_call.1} parent=1 // pred_check
      _
    $region35: #{tpu_custom_call.1} parent=1 // pred_check_branch
      %83 = sbr.rel (0) target = $region37
    $region36: #{tpu_custom_call.1} parent=1 // pred_region
      _
    $region37: #{tpu_custom_call.1} parent=1 // pred_fallthru
      _
    // Predicated region
    $region38: #{tpu_custom_call.1} parent=1 // pred_check
      _
    $region39: #{tpu_custom_call.1} parent=1 // pred_check_branch
      %85 = sbr.rel (0) target = $region41
    $region40: #{tpu_custom_call.1} parent=1 // pred_region
      %86 = dma.done [#allocation3], 128
    $region41: #{tpu_custom_call.1} parent=1 // pred_fallthru
      _
    // Predicated region
    $region42: #{tpu_custom_call.1} parent=1 // pred_check
      _
    $region43: #{tpu_custom_call.1} parent=1 // pred_check_branch
      %88 = sbr.rel (0) target = $region45
    $region44: #{tpu_custom_call.1} parent=1 // pred_region
      %89 = dma.done [#allocation6], 1024
    $region45: #{tpu_custom_call.1} parent=1 // pred_fallthru
      _
    // Predicated region
    $region46: #{tpu_custom_call.1} parent=1 // pred_check
      _
    $region47: #{tpu_custom_call.1} parent=1 // pred_check_branch
      %91 = sbr.rel (0) target = $region49
    $region48: #{tpu_custom_call.1} parent=1 // pred_region
      %92 = dma.done [#allocation6], 1024
    $region49: #{tpu_custom_call.1} parent=1 // pred_fallthru
      _
    // Predicated region
    $region50: #{tpu_custom_call.1} parent=1 // pred_check
      _
    $region51: #{tpu_custom_call.1} parent=1 // pred_check_branch
      %94 = sbr.rel (0) target = $region53
    $region52: #{tpu_custom_call.1} parent=1 // pred_region
      %95 = dma.done [#allocation9], 1024
    $region53: #{tpu_custom_call.1} parent=1 // pred_fallthru
      _
    // Predicated region
    $region54: #{tpu_custom_call.1} parent=1 // pred_check
      _
    $region55: #{tpu_custom_call.1} parent=1 // pred_check_branch
      %97 = sbr.rel (0) target = $region57
    $region56: #{tpu_custom_call.1} parent=1 // pred_region
      %98 = dma.done [#allocation9], 1024
    $region57: #{tpu_custom_call.1} parent=1 // pred_fallthru
      _
    %v99 = vld [vmem:[#allocation2] sm:$0xff]
    %v100 = vld [vmem:[#allocation5] sm:$0xff]
    %v101 = vld [vmem:[#allocation5 + $0x8] sm:$0xff]
    %v102 = vld [vmem:[#allocation5 + $0x10] sm:$0xff]
    %v103 = vld [vmem:[#allocation5 + $0x18] sm:$0xff]
    %v104 = vld [vmem:[#allocation5 + $0x20] sm:$0xff]
    %v105 = vld [vmem:[#allocation5 + $0x28] sm:$0xff]
    %v106 = vld [vmem:[#allocation5 + $0x30] sm:$0xff]
    %v107 = vld [vmem:[#allocation5 + $0x38] sm:$0xff]
    %v108 = vld [vmem:[%s2] sm:$0x1]
    %v110 = vlaneseq
    %v111 = vshrl.u32 %v110, 7
    %v112 = vsub.s32 0, %v111
    %v113 = vrot.slane %v108, %v112
    %vm115 = vcmask 523264
    %v117 = vsel %vm115, %v99, 0
    %119 = vmatprep.subr.mxu0 0.0
    %120 = vmatpush1.msra.mxu0 %v100
    %121 = vmatprep.subr.mxu0 0.0
    %122 = vmatpush1.msra.mxu0 %v101
    %123 = vmatprep.subr.mxu0 0.0
    %124 = vmatpush1.msra.mxu0 %v102
    %125 = vmatprep.subr.mxu0 0.0
    %126 = vmatpush1.msra.mxu0 %v103
    %127 = vmatprep.subr.mxu0 0.0
    %128 = vmatpush1.msra.mxu0 %v104
    %129 = vmatprep.subr.mxu0 0.0
    %130 = vmatpush1.msra.mxu0 %v105
    %131 = vmatprep.subr.mxu0 0.0
    %132 = vmatpush1.msra.mxu0 %v106
    %133 = vmatprep.subr.mxu0 0.0
    %134 = vmatpush1.msra.mxu0 %v107
    %135 = vmatprep.subr.mxu0 0.0
    %136 = vmatpush1.msra.mxu0 0.0
    %137 = vmatprep.subr.mxu0 0.0
    %138 = vmatpush1.msra.mxu0 0.0
    %139 = vmatprep.subr.mxu0 0.0
    %140 = vmatpush1.msra.mxu0 0.0
    %141 = vmatprep.subr.mxu0 0.0
    %142 = vmatpush1.msra.mxu0 0.0
    %143 = vmatprep.subr.mxu0 0.0
    %144 = vmatpush1.msra.mxu0 0.0
    %145 = vmatprep.subr.mxu0 0.0
    %146 = vmatpush1.msra.mxu0 0.0
    %147 = vmatprep.subr.mxu0 0.0
    %148 = vmatpush1.msra.mxu0 0.0
    %149 = vmatprep.subr.mxu0 0.0
    %150 = vmatpush1.msra.mxu0 0.0
    %151 = vmatprep.subr.mxu0 0.0
    %152 = vmatpush1.msra.mxu0 0.0
    %153 = vmatprep.subr.mxu0 0.0
    %154 = vmatpush1.msra.mxu0 0.0
    %155 = vmatprep.subr.mxu0 0.0
    %156 = vmatpush1.msra.mxu0 0.0
    %157 = vmatprep.subr.mxu0 0.0
    %158 = vmatpush1.msra.mxu0 0.0
    %159 = vmatprep.subr.mxu0 0.0
    %160 = vmatpush1.msra.mxu0 0.0
    %161 = vmatprep.subr.mxu0 0.0
    %162 = vmatpush1.msra.mxu0 0.0
    %163 = vmatprep.subr.mxu0 0.0
    %164 = vmatpush1.msra.mxu0 0.0
    %165 = vmatprep.subr.mxu0 0.0
    %166 = vmatpush1.msra.mxu0 0.0
    %167 = vmatprep.subr.mxu0 0.0
    %168 = vmatpush1.msra.mxu0 0.0
    %169 = vmatprep.subr.mxu0 0.0
    %170 = vmatpush1.msra.mxu0 0.0
    %171 = vmatprep.subr.mxu0 0.0
    %172 = vmatpush1.msra.mxu0 0.0
    %173 = vmatprep.subr.mxu0 0.0
    %174 = vmatpush1.msra.mxu0 0.0
    %175 = vmatprep.subr.mxu0 0.0
    %176 = vmatpush1.msra.mxu0 0.0
    %177 = vmatprep.subr.mxu0 0.0
    %178 = vmatpush1.msra.mxu0 0.0
    %179 = vmatprep.subr.mxu0 0.0
    %180 = vmatpush1.msra.mxu0 0.0
    %181 = vmatprep.subr.mxu0 0.0
    %182 = vmatpush1.msra.mxu0 0.0
    %183 = vmatprep.mubr.f32.mxu0 0.0
    %184 = vmatmul.mubr.f32.gmra.mrb[0].mxu0 %v117
    %v185 = vpop.f32.mrb[0].mxu0
    %v186 = vadd.f32 %v113, %v185
    %v187 = vpop.f32.mrb[0].mxu0
    %188 = vdwg.mxu0
    %v189 = vmax.f32 %v186, 0.0
    %v190 = vld [vmem:[#allocation7] sm:$0xff]
    %v191 = vld [vmem:[#allocation7 + $0x8] sm:$0xff]
    %v192 = vld [vmem:[#allocation7 + $0x10] sm:$0xff]
    %v193 = vld [vmem:[#allocation7 + $0x18] sm:$0xff]
    %v194 = vld [vmem:[#allocation7 + $0x20] sm:$0xff]
    %v195 = vld [vmem:[#allocation7 + $0x28] sm:$0xff]
    %v196 = vld [vmem:[#allocation7 + $0x30] sm:$0xff]
    %v197 = vld [vmem:[#allocation7 + $0x38] sm:$0xff]
    %v198 = vld [vmem:[%s4] sm:$0x1]
    %v200 = vlaneseq
    %v201 = vshrl.u32 %v200, 7
    %v202 = vsub.s32 0, %v201
    %v203 = vrot.slane %v198, %v202
    %v206 = vsel %vm115, %v189, 0
    %208 = vmatprep.subr.mxu0 0.0
    %209 = vmatpush1.msra.mxu0 %v190
    %210 = vmatprep.subr.mxu0 0.0
    %211 = vmatpush1.msra.mxu0 %v191
    %212 = vmatprep.subr.mxu0 0.0
    %213 = vmatpush1.msra.mxu0 %v192
    %214 = vmatprep.subr.mxu0 0.0
    %215 = vmatpush1.msra.mxu0 %v193
    %216 = vmatprep.subr.mxu0 0.0
    %217 = vmatpush1.msra.mxu0 %v194
    %218 = vmatprep.subr.mxu0 0.0
    %219 = vmatpush1.msra.mxu0 %v195
    %220 = vmatprep.subr.mxu0 0.0
    %221 = vmatpush1.msra.mxu0 %v196
    %222 = vmatprep.subr.mxu0 0.0
    %223 = vmatpush1.msra.mxu0 %v197
    %224 = vmatprep.subr.mxu0 0.0
    %225 = vmatpush1.msra.mxu0 0.0
    %226 = vmatprep.subr.mxu0 0.0
    %227 = vmatpush1.msra.mxu0 0.0
    %228 = vmatprep.subr.mxu0 0.0
    %229 = vmatpush1.msra.mxu0 0.0
    %230 = vmatprep.subr.mxu0 0.0
    %231 = vmatpush1.msra.mxu0 0.0
    %232 = vmatprep.subr.mxu0 0.0
    %233 = vmatpush1.msra.mxu0 0.0
    %234 = vmatprep.subr.mxu0 0.0
    %235 = vmatpush1.msra.mxu0 0.0
    %236 = vmatprep.subr.mxu0 0.0
    %237 = vmatpush1.msra.mxu0 0.0
    %238 = vmatprep.subr.mxu0 0.0
    %239 = vmatpush1.msra.mxu0 0.0
    %240 = vmatprep.subr.mxu0 0.0
    %241 = vmatpush1.msra.mxu0 0.0
    %242 = vmatprep.subr.mxu0 0.0
    %243 = vmatpush1.msra.mxu0 0.0
    %244 = vmatprep.subr.mxu0 0.0
    %245 = vmatpush1.msra.mxu0 0.0
    %246 = vmatprep.subr.mxu0 0.0
    %247 = vmatpush1.msra.mxu0 0.0
    %248 = vmatprep.subr.mxu0 0.0
    %249 = vmatpush1.msra.mxu0 0.0
    %250 = vmatprep.subr.mxu0 0.0
    %251 = vmatpush1.msra.mxu0 0.0
    %252 = vmatprep.subr.mxu0 0.0
    %253 = vmatpush1.msra.mxu0 0.0
    %254 = vmatprep.subr.mxu0 0.0
    %255 = vmatpush1.msra.mxu0 0.0
    %256 = vmatprep.subr.mxu0 0.0
    %257 = vmatpush1.msra.mxu0 0.0
    %258 = vmatprep.subr.mxu0 0.0
    %259 = vmatpush1.msra.mxu0 0.0
    %260 = vmatprep.subr.mxu0 0.0
    %261 = vmatpush1.msra.mxu0 0.0
    %262 = vmatprep.subr.mxu0 0.0
    %263 = vmatpush1.msra.mxu0 0.0
    %264 = vmatprep.subr.mxu0 0.0
    %265 = vmatpush1.msra.mxu0 0.0
    %266 = vmatprep.subr.mxu0 0.0
    %267 = vmatpush1.msra.mxu0 0.0
    %268 = vmatprep.subr.mxu0 0.0
    %269 = vmatpush1.msra.mxu0 0.0
    %270 = vmatprep.subr.mxu0 0.0
    %271 = vmatpush1.msra.mxu0 0.0
    %272 = vmatprep.mubr.f32.mxu0 0.0
    %273 = vmatmul.mubr.f32.gmra.mrb[0].mxu0 %v206
    %v274 = vpop.f32.mrb[0].mxu0
    %v275 = vadd.f32 %v203, %v274
    %v276 = vpop.f32.mrb[0].mxu0
    %277 = vdwg.mxu0
    %v278 = vmax.f32 %v275, 0.0
    %v279 = vld [vmem:[#allocation8] sm:$0xff]
    %v280 = vld [vmem:[#allocation8 + $0x8] sm:$0xff]
    %v281 = vld [vmem:[#allocation8 + $0x10] sm:$0xff]
    %v282 = vld [vmem:[#allocation8 + $0x18] sm:$0xff]
    %v283 = vld [vmem:[#allocation8 + $0x20] sm:$0xff]
    %v284 = vld [vmem:[#allocation8 + $0x28] sm:$0xff]
    %v285 = vld [vmem:[#allocation8 + $0x30] sm:$0xff]
    %v286 = vld [vmem:[#allocation8 + $0x38] sm:$0xff]
    %v287 = vld [vmem:[%s6] sm:$0x1]
    %v289 = vlaneseq
    %v290 = vshrl.u32 %v289, 7
    %v291 = vsub.s32 0, %v290
    %v292 = vrot.slane %v287, %v291
    %v295 = vsel %vm115, %v278, 0
    %297 = vmatprep.subr.mxu0 0.0
    %298 = vmatpush1.msra.mxu0 %v279
    %299 = vmatprep.subr.mxu0 0.0
    %300 = vmatpush1.msra.mxu0 %v280
    %301 = vmatprep.subr.mxu0 0.0
    %302 = vmatpush1.msra.mxu0 %v281
    %303 = vmatprep.subr.mxu0 0.0
    %304 = vmatpush1.msra.mxu0 %v282
    %305 = vmatprep.subr.mxu0 0.0
    %306 = vmatpush1.msra.mxu0 %v283
    %307 = vmatprep.subr.mxu0 0.0
    %308 = vmatpush1.msra.mxu0 %v284
    %309 = vmatprep.subr.mxu0 0.0
    %310 = vmatpush1.msra.mxu0 %v285
    %311 = vmatprep.subr.mxu0 0.0
    %312 = vmatpush1.msra.mxu0 %v286
    %313 = vmatprep.subr.mxu0 0.0
    %314 = vmatpush1.msra.mxu0 0.0
    %315 = vmatprep.subr.mxu0 0.0
    %316 = vmatpush1.msra.mxu0 0.0
    %317 = vmatprep.subr.mxu0 0.0
    %318 = vmatpush1.msra.mxu0 0.0
    %319 = vmatprep.subr.mxu0 0.0
    %320 = vmatpush1.msra.mxu0 0.0
    %321 = vmatprep.subr.mxu0 0.0
    %322 = vmatpush1.msra.mxu0 0.0
    %323 = vmatprep.subr.mxu0 0.0
    %324 = vmatpush1.msra.mxu0 0.0
    %325 = vmatprep.subr.mxu0 0.0
    %326 = vmatpush1.msra.mxu0 0.0
    %327 = vmatprep.subr.mxu0 0.0
    %328 = vmatpush1.msra.mxu0 0.0
    %329 = vmatprep.subr.mxu0 0.0
    %330 = vmatpush1.msra.mxu0 0.0
    %331 = vmatprep.subr.mxu0 0.0
    %332 = vmatpush1.msra.mxu0 0.0
    %333 = vmatprep.subr.mxu0 0.0
    %334 = vmatpush1.msra.mxu0 0.0
    %335 = vmatprep.subr.mxu0 0.0
    %336 = vmatpush1.msra.mxu0 0.0
    %337 = vmatprep.subr.mxu0 0.0
    %338 = vmatpush1.msra.mxu0 0.0
    %339 = vmatprep.subr.mxu0 0.0
    %340 = vmatpush1.msra.mxu0 0.0
    %341 = vmatprep.subr.mxu0 0.0
    %342 = vmatpush1.msra.mxu0 0.0
    %343 = vmatprep.subr.mxu0 0.0
    %344 = vmatpush1.msra.mxu0 0.0
    %345 = vmatprep.subr.mxu0 0.0
    %346 = vmatpush1.msra.mxu0 0.0
    %347 = vmatprep.subr.mxu0 0.0
    %348 = vmatpush1.msra.mxu0 0.0
    %349 = vmatprep.subr.mxu0 0.0
    %350 = vmatpush1.msra.mxu0 0.0
    %351 = vmatprep.subr.mxu0 0.0
    %352 = vmatpush1.msra.mxu0 0.0
    %353 = vmatprep.subr.mxu0 0.0
    %354 = vmatpush1.msra.mxu0 0.0
    %355 = vmatprep.subr.mxu0 0.0
    %356 = vmatpush1.msra.mxu0 0.0
    %357 = vmatprep.subr.mxu0 0.0
    %358 = vmatpush1.msra.mxu0 0.0
    %359 = vmatprep.subr.mxu0 0.0
    %360 = vmatpush1.msra.mxu0 0.0
    %361 = vmatprep.mubr.f32.mxu0 0.0
    %362 = vmatmul.mubr.f32.gmra.mrb[0].mxu0 %v295
    %v363 = vpop.f32.mrb[0].mxu0
    %v364 = vadd.f32 %v292, %v363
    %v365 = vpop.f32.mrb[0].mxu0
    %366 = vdwg.mxu0
    %v367 = vmax.f32 %v364, 0.0
    %v368 = vld [vmem:[#allocation10] sm:$0xff]
    %v369 = vld [vmem:[#allocation10 + $0x8] sm:$0xff]
    %v370 = vld [vmem:[#allocation10 + $0x10] sm:$0xff]
    %v371 = vld [vmem:[#allocation10 + $0x18] sm:$0xff]
    %v372 = vld [vmem:[#allocation10 + $0x20] sm:$0xff]
    %v373 = vld [vmem:[#allocation10 + $0x28] sm:$0xff]
    %v374 = vld [vmem:[#allocation10 + $0x30] sm:$0xff]
    %v375 = vld [vmem:[#allocation10 + $0x38] sm:$0xff]
    %v376 = vld [vmem:[%s8] sm:$0x1]
    %v378 = vlaneseq
    %v379 = vshrl.u32 %v378, 7
    %v380 = vsub.s32 0, %v379
    %v381 = vrot.slane %v376, %v380
    %v384 = vsel %vm115, %v367, 0
    %386 = vmatprep.subr.mxu0 0.0
    %387 = vmatpush1.msra.mxu0 %v368
    %388 = vmatprep.subr.mxu0 0.0
    %389 = vmatpush1.msra.mxu0 %v369
    %390 = vmatprep.subr.mxu0 0.0
    %391 = vmatpush1.msra.mxu0 %v370
    %392 = vmatprep.subr.mxu0 0.0
    %393 = vmatpush1.msra.mxu0 %v371
    %394 = vmatprep.subr.mxu0 0.0
    %395 = vmatpush1.msra.mxu0 %v372
    %396 = vmatprep.subr.mxu0 0.0
    %397 = vmatpush1.msra.mxu0 %v373
    %398 = vmatprep.subr.mxu0 0.0
    %399 = vmatpush1.msra.mxu0 %v374
    %400 = vmatprep.subr.mxu0 0.0
    %401 = vmatpush1.msra.mxu0 %v375
    %402 = vmatprep.subr.mxu0 0.0
    %403 = vmatpush1.msra.mxu0 0.0
    %404 = vmatprep.subr.mxu0 0.0
    %405 = vmatpush1.msra.mxu0 0.0
    %406 = vmatprep.subr.mxu0 0.0
    %407 = vmatpush1.msra.mxu0 0.0
    %408 = vmatprep.subr.mxu0 0.0
    %409 = vmatpush1.msra.mxu0 0.0
    %410 = vmatprep.subr.mxu0 0.0
    %411 = vmatpush1.msra.mxu0 0.0
    %412 = vmatprep.subr.mxu0 0.0
    %413 = vmatpush1.msra.mxu0 0.0
    %414 = vmatprep.subr.mxu0 0.0
    %415 = vmatpush1.msra.mxu0 0.0
    %416 = vmatprep.subr.mxu0 0.0
    %417 = vmatpush1.msra.mxu0 0.0
    %418 = vmatprep.subr.mxu0 0.0
    %419 = vmatpush1.msra.mxu0 0.0
    %420 = vmatprep.subr.mxu0 0.0
    %421 = vmatpush1.msra.mxu0 0.0
    %422 = vmatprep.subr.mxu0 0.0
    %423 = vmatpush1.msra.mxu0 0.0
    %424 = vmatprep.subr.mxu0 0.0
    %425 = vmatpush1.msra.mxu0 0.0
    %426 = vmatprep.subr.mxu0 0.0
    %427 = vmatpush1.msra.mxu0 0.0
    %428 = vmatprep.subr.mxu0 0.0
    %429 = vmatpush1.msra.mxu0 0.0
    %430 = vmatprep.subr.mxu0 0.0
    %431 = vmatpush1.msra.mxu0 0.0
    %432 = vmatprep.subr.mxu0 0.0
    %433 = vmatpush1.msra.mxu0 0.0
    %434 = vmatprep.subr.mxu0 0.0
    %435 = vmatpush1.msra.mxu0 0.0
    %436 = vmatprep.subr.mxu0 0.0
    %437 = vmatpush1.msra.mxu0 0.0
    %438 = vmatprep.subr.mxu0 0.0
    %439 = vmatpush1.msra.mxu0 0.0
    %440 = vmatprep.subr.mxu0 0.0
    %441 = vmatpush1.msra.mxu0 0.0
    %442 = vmatprep.subr.mxu0 0.0
    %443 = vmatpush1.msra.mxu0 0.0
    %444 = vmatprep.subr.mxu0 0.0
    %445 = vmatpush1.msra.mxu0 0.0
    %446 = vmatprep.subr.mxu0 0.0
    %447 = vmatpush1.msra.mxu0 0.0
    %448 = vmatprep.subr.mxu0 0.0
    %449 = vmatpush1.msra.mxu0 0.0
    %450 = vmatprep.mubr.f32.mxu0 0.0
    %451 = vmatmul.mubr.f32.gmra.mrb[0].mxu0 %v384
    %v452 = vpop.f32.mrb[0].mxu0
    %v453 = vadd.f32 %v381, %v452
    %v454 = vpop.f32.mrb[0].mxu0
    %455 = vdwg.mxu0
    %v456 = vmax.f32 %v453, 0.0
    %458 = vrot.lane.b32.xlu0 %v456, 64
    %v459 = vpop.permute.xlu0 %458
    %v461 = vsel %vm115, %v278, %v459
    %462 = vst [vmem:[#allocation11] sm:$0xff] %v461
    // Predicated region
    $region58: #{tpu_custom_call.1} parent=1 // pred_check
      _
    $region59: #{tpu_custom_call.1} parent=1 // pred_check_branch
      %464 = sbr.rel (0) target = $region61
    $region60: #{tpu_custom_call.1} parent=1 // pred_region
      %s466 = ssub.s32 128, 128
      %467 = vsyncadd [#allocation4], %s466
      %s469 = sshll.u32 [#allocation11], 4
      %s470 = int_to_ptr.vmem [resolvable:$true] %s469
      %472 = dma.vmem_to_hbm [thread:$0]  %s470, 128, %s9, [#allocation4]
    $region61: #{tpu_custom_call.1} parent=1 // pred_fallthru
      _
    // Predicated region
    $region62: #{tpu_custom_call.1} parent=1 // pred_check
      _
    $region63: #{tpu_custom_call.1} parent=1 // pred_check_branch
      %474 = sbr.rel (0) target = $region65
    $region64: #{tpu_custom_call.1} parent=1 // pred_region
      %475 = dma.done [#allocation4], 128
    $region65: #{tpu_custom_call.1} parent=1 // pred_fallthru
      _
    %476 = vsyncpa [#allocation3], 1
    %477 = vsyncpa [#allocation6], 1
    %478 = vsyncpa [#allocation9], 1
    %479 = vsyncpa [#allocation4], 1

</llo_original>
